<compile_context>
chip_gen: v5e
topology: v5e:2x2
jax: 0.10.0
libtpu: 0.0.40
codegen_flags: <defaults>
</compile_context>

<pallas_src>
import jax
import jax.numpy as jnp
from jax.experimental import pallas as pl
from jax.experimental.pallas import tpu as pltpu

PAD_EXTRA = 250  # the "+250" extended-vocab padding from the PyTorch code
LANE = 128       # vocab tile width (lane-aligned)


# ----------------------------- kernel 1 ---------------------------------
def _gru_attn_kernel(tok_ref, emb_ref, prev_h_ref, enc_ref, prev_att_ref,
                     wgru_ref, bgru_ref, wh_ref, wd_ref, woh_ref, boh_ref,
                     hnew_ref, att_ref, hid_ref, pgen_ref):
    """Per-batch-element GRU step + both attentions + combined projection."""
    del tok_ref  # consumed only by the embedding-gather index_map
    H = hnew_ref.shape[-1]
    E = hid_ref.shape[-1]

    # TODO(synk): training-mode embedding dropout(p=0.1) omitted — eval mode.
    x = emb_ref[0]                      # (1, E)  gathered embedding row
    prev_h = prev_h_ref[0]              # (T_dec, H)
    enc = enc_ref[0]                    # (S, H)
    prev_att = prev_att_ref[0]          # (T_prev, S)
    last_h = prev_h[-1:, :]             # (1, H)

    # --- single-step GRU cell: one block-diagonal MXU matmul gives [gi | gh] ---
    xh = jnp.concatenate([x, last_h], axis=-1)                        # (1, E+H)
    gates = jnp.dot(xh, wgru_ref[...],
                    preferred_element_type=jnp.float32) + bgru_ref[...]
    gi = gates[:, :3 * H]
    gh = gates[:, 3 * H:]
    r = jax.nn.sigmoid(gi[:, :H] + gh[:, :H])
    z = jax.nn.sigmoid(gi[:, H:2 * H] + gh[:, H:2 * H])
    n = jnp.tanh(gi[:, 2 * H:] + r * gh[:, 2 * H:])
    h_new = (1.0 - z) * n + z * last_h                                # (1, H)

    # --- temporal encoder attention (previous_att is not None branch) ---
    scores = jax.lax.dot_general(
        h_new * wh_ref[...], enc,
        dimension_numbers=(((1,), (1,)), ((), ())),
        preferred_element_type=jnp.float32)                           # (1, S)
    denom = jnp.sum(jnp.exp(prev_att), axis=0, keepdims=True)         # (1, S)
    temporal = jnp.exp(scores) * pl.reciprocal(denom, approx=True)
    att = temporal * pl.reciprocal(
        jnp.sum(temporal, axis=-1, keepdims=True), approx=True)       # (1, S)
    enc_ctx = jnp.dot(att, enc, preferred_element_type=jnp.float32)   # (1, H)

    # --- intra-decoder attention ---
    dsc = jax.lax.dot_general(
        h_new * wd_ref[...], prev_h,
        dimension_numbers=(((1,), (1,)), ((), ())),
        preferred_element_type=jnp.float32)                           # (1, T_dec)
    dsc = dsc - jnp.max(dsc, axis=-1, keepdims=True)
    dexp = jnp.exp(dsc)
    datt = dexp * pl.reciprocal(jnp.sum(dexp, axis=-1, keepdims=True),
                                approx=True)
    dec_ctx = jnp.dot(datt, prev_h, preferred_element_type=jnp.float32)  # (1, H)

    # --- combined projection; gen gate folded in as one extra output column ---
    combined = jnp.concatenate([h_new, enc_ctx, dec_ctx], axis=-1)    # (1, 3H)
    hid_aug = jnp.dot(combined, woh_ref[...],
                      preferred_element_type=jnp.float32) + boh_ref[...]
    hid = hid_aug[:, :E]                                              # (1, E)
    p_gen = jax.nn.sigmoid(hid_aug[:, E:E + 1])                       # (1, 1)

    hnew_ref[...] = h_new[None]
    att_ref[...] = att[None]
    hid_ref[...] = hid[None]
    pgen_ref[...] = p_gen[None]


# ----------------------------- kernel 2 ---------------------------------
def _vocab_pointer_kernel(hid_ref, pgen_ref, att_ref, ids_ref,
                          wov_ref, bov_ref, pvoc_ref, pfin_ref):
    """One 128-wide vocab tile: bf16 vocab projection + pointer scatter-add."""
    j = pl.program_id(0)
    B, TN = pvoc_ref.shape
    S = ids_ref.shape[1]

    p_vocab = jnp.dot(hid_ref[...].astype(wov_ref.dtype), wov_ref[...],
                      preferred_element_type=jnp.float32) + bov_ref[...]

    # scatter_add restricted to this vocab tile: per-tile one-hot fed to MXU.
    col = jax.lax.broadcasted_iota(jnp.int32, (B, S, TN), 2) + j * TN
    onehot = (ids_ref[...][:, :, None] == col).astype(jnp.float32)    # (B,S,TN)
    att3 = att_ref[...][:, None, :]                                   # (B,1,S)
    token_dist = jax.lax.dot_general(
        att3, onehot,
        dimension_numbers=(((2,), (1,)), ((0,), (0,))),
        preferred_element_type=jnp.float32)[:, 0, :]                  # (B,TN)

    p_gen = pgen_ref[...]                                             # (B,1)
    pvoc_ref[...] = p_vocab
    pfin_ref[...] = p_gen * p_vocab + (1.0 - p_gen) * token_dist


# ----------------------------- wrapper -----------------------------------
def attn_decoder_forward(params, input_token, prev_decoder_h_states,
                         encoder_states, full_input_var, previous_att):
    """Returns (decoder_h_states, p_final, p_gen, p_vocab, att_dist, previous_att_new)."""
    # TODO(synk): only the `previous_att is not None` branch (the general decode
    # step) is implemented; the first-step (previous_att=None) path is not.
    f32 = jnp.float32
    B, T_dec, H = prev_decoder_h_states.shape
    S = encoder_states.shape[1]
    T_prev = previous_att.shape[1]
    V, E = params["emb"].shape
    Vext = V + PAD_EXTRA
    Vext_pad = ((Vext + LANE - 1) // LANE) * LANE
    n_vt = Vext_pad // LANE

    # ---------------- weight preparation (wrapper-side, once) ----------------
    # GRU weights block-diagonal so a single MXU matmul yields [gi | gh].
    wih_t = params["W_ih"].T.astype(f32)                  # (E, 3H)
    whh_t = params["W_hh"].T.astype(f32)                  # (H, 3H)
    w_gru = jnp.concatenate([
        jnp.concatenate([wih_t, jnp.zeros((E, 3 * H), f32)], axis=1),
        jnp.concatenate([jnp.zeros((H, 3 * H), f32), whh_t], axis=1)], axis=0)
    b_gru = jnp.concatenate([params["b_ih"], params["b_hh"]]).reshape(1, 6 * H)

    # out_hidden with gen_layer folded in as one extra output column.
    woh_aug = jnp.concatenate([params["W_oh"].T, params["W_gen"].T], axis=1)   # (3H, E+1)
    boh_aug = jnp.concatenate([params["b_oh"], params["b_gen"]]).reshape(1, E + 1)

    # Vocab projection, zero-padded to a lane-dense multiple of 128; bf16 MXU operand.
    wov_pad = jnp.zeros((E, Vext_pad), f32).at[:, :V].set(params["W_ov"].T)
    wov_pad = wov_pad.astype(jnp.bfloat16)
    bov_pad = jnp.zeros((1, Vext_pad), f32).at[:, :V].set(params["b_ov"])

    tok = input_token.reshape(B).astype(jnp.int32)
    emb3 = params["emb"][:, None, :]                      # (V, 1, E) — (1,1,E) row gather
    w_h2 = params["w_h"].reshape(1, H)
    w_d2 = params["w_d"].reshape(1, H)

    # ---------------- kernel 1: GRU + attentions (grid over batch) -----------
    k1_grid = pltpu.PrefetchScalarGridSpec(
        num_scalar_prefetch=1,
        grid=(B,),
        in_specs=[
            pl.BlockSpec((1, 1, E), lambda b, tok_ref: (tok_ref[b], 0, 0)),   # emb row
            pl.BlockSpec((1, T_dec, H), lambda b, tok_ref: (b, 0, 0)),        # prev_h
            pl.BlockSpec((1, S, H), lambda b, tok_ref: (b, 0, 0)),            # enc
            pl.BlockSpec((1, T_prev, S), lambda b, tok_ref: (b, 0, 0)),       # prev_att
            pl.BlockSpec((E + H, 6 * H), lambda b, tok_ref: (0, 0)),          # w_gru
            pl.BlockSpec((1, 6 * H), lambda b, tok_ref: (0, 0)),              # b_gru
            pl.BlockSpec((1, H), lambda b, tok_ref: (0, 0)),                  # w_h
            pl.BlockSpec((1, H), lambda b, tok_ref: (0, 0)),                  # w_d
            pl.BlockSpec((3 * H, E + 1), lambda b, tok_ref: (0, 0)),          # woh_aug
            pl.BlockSpec((1, E + 1), lambda b, tok_ref: (0, 0)),              # boh_aug
        ],
        out_specs=(
            pl.BlockSpec((1, 1, H), lambda b, tok_ref: (b, 0, 0)),
            pl.BlockSpec((1, 1, S), lambda b, tok_ref: (b, 0, 0)),
            pl.BlockSpec((1, 1, E), lambda b, tok_ref: (b, 0, 0)),
            pl.BlockSpec((1, 1, 1), lambda b, tok_ref: (b, 0, 0)),
        ),
    )
    h_new, att, hid, p_gen = pl.pallas_call(
        _gru_attn_kernel,
        out_shape=(
            jax.ShapeDtypeStruct((B, 1, H), f32),
            jax.ShapeDtypeStruct((B, 1, S), f32),
            jax.ShapeDtypeStruct((B, 1, E), f32),
            jax.ShapeDtypeStruct((B, 1, 1), f32),
        ),
        grid_spec=k1_grid,
        compiler_params=pltpu.CompilerParams(
            dimension_semantics=("parallel",),
            vmem_limit_bytes=32 * 1024 * 1024),
    )(tok, emb3, prev_decoder_h_states, encoder_states, previous_att,
      w_gru, b_gru, w_h2, w_d2, woh_aug, boh_aug)

    # ---------------- kernel 2: vocab projection + pointer mix (V tiles) -----
    hid2 = hid[:, 0, :]          # (B, E)
    p_gen2 = p_gen[:, 0, :]      # (B, 1)
    att2 = att[:, 0, :]          # (B, S)
    ids2 = full_input_var.astype(jnp.int32)

    bytes_accessed = int(wov_pad.size * 2 + bov_pad.size * 4
                         + 2 * B * Vext_pad * 4
                         + (hid2.size + att2.size + ids2.size + p_gen2.size) * 4)
    pvocab_pad, pfinal_pad = pl.pallas_call(
        _vocab_pointer_kernel,
        out_shape=(
            jax.ShapeDtypeStruct((B, Vext_pad), f32),
            jax.ShapeDtypeStruct((B, Vext_pad), f32),
        ),
        grid=(n_vt,),
        in_specs=[
            pl.BlockSpec((B, E), lambda j: (0, 0)),
            pl.BlockSpec((B, 1), lambda j: (0, 0)),
            pl.BlockSpec((B, S), lambda j: (0, 0)),
            pl.BlockSpec((B, S), lambda j: (0, 0)),
            pl.BlockSpec((E, LANE), lambda j: (0, j)),
            pl.BlockSpec((1, LANE), lambda j: (0, j)),
        ],
        out_specs=(
            pl.BlockSpec((B, LANE), lambda j: (0, j)),
            pl.BlockSpec((B, LANE), lambda j: (0, j)),
        ),
        compiler_params=pltpu.CompilerParams(
            dimension_semantics=("parallel",),
            vmem_limit_bytes=32 * 1024 * 1024),
        cost_estimate=pl.CostEstimate(
            flops=2 * B * E * Vext_pad + 2 * B * S * Vext_pad,
            transcendentals=0,
            bytes_accessed=bytes_accessed),
    )(hid2, p_gen2, att2, ids2, wov_pad, bov_pad)

    p_vocab = pvocab_pad[:, :V]
    p_final = pfinal_pad[:, :Vext]
    att_dist = att2
    decoder_h_states = jnp.concatenate([prev_decoder_h_states, h_new], axis=1)
    previous_att_new = jnp.concatenate([previous_att, att], axis=1)
    return decoder_h_states, p_final, p_gen2, p_vocab, att_dist, previous_att_new


# ----------------------- pure-JAX reference (for checking) -----------------------
def _reference_forward(params, input_token, prev_h, enc, full_inp, prev_att):
    B = input_token.shape[0]
    H = prev_h.shape[-1]
    V = params["emb"].shape[0]
    Vext = V + PAD_EXTRA

    x = params["emb"][input_token[:, 0]]
    last_h = prev_h[:, -1, :]
    gi = x @ params["W_ih"].T + params["b_ih"]
    gh = last_h @ params["W_hh"].T + params["b_hh"]
    r = jax.nn.sigmoid(gi[:, :H] + gh[:, :H])
    z = jax.nn.sigmoid(gi[:, H:2 * H] + gh[:, H:2 * H])
    n = jnp.tanh(gi[:, 2 * H:] + r * gh[:, 2 * H:])
    h_new = (1.0 - z) * n + z * last_h

    scores = jnp.sum(h_new[:, None, :] * (params["w_h"] * enc), axis=-1)
    temporal = jnp.exp(scores) / jnp.sum(jnp.exp(prev_att), axis=1)
    att = temporal / jnp.sum(temporal, axis=-1, keepdims=True)
    enc_ctx = jnp.sum(att[:, :, None] * enc, axis=1)

    dsc = jnp.sum(h_new[:, None, :] * (params["w_d"] * prev_h), axis=-1)
    datt = jax.nn.softmax(dsc, axis=-1)
    dec_ctx = jnp.sum(datt[:, :, None] * prev_h, axis=1)

    combined = jnp.concatenate([h_new, enc_ctx, dec_ctx], axis=-1)
    hid = combined @ params["W_oh"].T + params["b_oh"]
    p_vocab = hid @ params["W_ov"].T + params["b_ov"]
    p_gen = jax.nn.sigmoid(combined @ params["W_gen"].T + params["b_gen"])

    token_dist = jnp.zeros((B, Vext), jnp.float32).at[
        jnp.arange(B)[:, None], full_inp].add(att)
    p_final = jnp.concatenate(
        [p_vocab * p_gen, jnp.zeros((B, PAD_EXTRA), jnp.float32)], axis=-1
    ) + (1.0 - p_gen) * token_dist
    return h_new, p_final, p_gen, p_vocab, att


def init_params(key, V, E, H):
    ks = jax.random.split(key, 12)
    s = 0.1
    f = jnp.float32
    return {
        "emb":   jax.random.normal(ks[0], (V, E), f) * s,
        "W_ih":  jax.random.normal(ks[1], (3 * H, E), f) * s,
        "W_hh":  jax.random.normal(ks[2], (3 * H, H), f) * s,
        "b_ih":  jax.random.normal(ks[3], (3 * H,), f) * s,
        "b_hh":  jax.random.normal(ks[4], (3 * H,), f) * s,
        "w_h":   jax.random.normal(ks[5], (H,), f) * s,
        "w_d":   jax.random.normal(ks[6], (H,), f) * s,
        "W_oh":  jax.random.normal(ks[7], (E, 3 * H), f) * s,
        "b_oh":  jax.random.normal(ks[8], (E,), f) * s,
        "W_ov":  jax.random.normal(ks[9], (V, E), f) * s,
        "b_ov":  jax.random.normal(ks[10], (V,), f) * s,
        "W_gen": jax.random.normal(ks[11], (1, 3 * H), f) * s,
        "b_gen": jnp.zeros((1,), f),
    }


if __name__ == "__main__":
    B, E, H = 2, 32, 32          # batch, embedding_size, hidden_size (small)
    V = 50                       # vocab_size (small)
    S_ENC, T_DEC, T_PREV = 8, 4, 3

    root = jax.random.PRNGKey(0)
    k_par, k_tok, k_prevh, k_enc, k_full, k_patt = jax.random.split(root, 6)

    params = init_params(k_par, V, E, H)
    input_token = jax.random.randint(k_tok, (B, 1), 0, V, dtype=jnp.int32)
    prev_decoder_h_states = jax.random.normal(k_prevh, (B, T_DEC, H), jnp.float32)
    encoder_states = jax.random.normal(k_enc, (B, S_ENC, H), jnp.float32)
    full_input_var = jax.random.randint(k_full, (B, S_ENC), 0, V + PAD_EXTRA,
                                        dtype=jnp.int32)
    previous_att = jax.random.normal(k_patt, (B, T_PREV, S_ENC), jnp.float32) * 0.1

    outs = attn_decoder_forward(params, input_token, prev_decoder_h_states,
                                encoder_states, full_input_var, previous_att)
    outs = jax.block_until_ready(outs)
    dec_h_states, p_final, p_gen, p_vocab, att_dist, previous_att_new = outs

    # shape checks
    assert dec_h_states.shape == (B, T_DEC + 1, H)
    assert p_final.shape == (B, V + PAD_EXTRA)
    assert p_gen.shape == (B, 1)
    assert p_vocab.shape == (B, V)
    assert att_dist.shape == (B, S_ENC)
    assert previous_att_new.shape == (B, T_PREV + 1, S_ENC)

    # numerical check against pure-JAX reference
    ref_h, ref_pf, ref_pg, ref_pv, ref_att = _reference_forward(
        params, input_token, prev_decoder_h_states, encoder_states,
        full_input_var, previous_att)
    for got, want in ((dec_h_states[:, -1, :], ref_h), (p_final, ref_pf),
                      (p_gen, ref_pg), (p_vocab, ref_pv), (att_dist, ref_att)):
        if not jnp.allclose(got, want, rtol=1e-2, atol=1e-2):
            raise AssertionError("Pallas kernel output mismatch vs reference")

    print("KERNEL_OK")
</pallas_src>

<mosaic_0001>
module attributes {stable_mosaic.version = 11 : i64} {
  func.func @_gru_attn_kernel(%arg0: i32, %arg1: memref<2xi32, #tpu.memory_space<smem>>, %arg2: memref<1x1x32xf32, #tpu.memory_space<vmem>>, %arg3: memref<1x4x32xf32, #tpu.memory_space<vmem>>, %arg4: memref<1x8x32xf32, #tpu.memory_space<vmem>>, %arg5: memref<1x3x8xf32, #tpu.memory_space<vmem>>, %arg6: memref<64x192xf32, #tpu.memory_space<vmem>>, %arg7: memref<1x192xf32, #tpu.memory_space<vmem>>, %arg8: memref<1x32xf32, #tpu.memory_space<vmem>>, %arg9: memref<1x32xf32, #tpu.memory_space<vmem>>, %arg10: memref<96x33xf32, #tpu.memory_space<vmem>>, %arg11: memref<1x33xf32, #tpu.memory_space<vmem>>, %arg12: memref<1x1x32xf32, #tpu.memory_space<vmem>>, %arg13: memref<1x1x8xf32, #tpu.memory_space<vmem>>, %arg14: memref<1x1x32xf32, #tpu.memory_space<vmem>>, %arg15: memref<1x1x1xf32, #tpu.memory_space<vmem>>) attributes {dimension_semantics = [#tpu.dimension_semantics<parallel>], iteration_bounds = array<i64: 2>, scalar_prefetch = 1 : i64, scratch_operands = 0 : i64, tpu.core_type = #tpu.core_type<tc>, window_params = [{transform_indices = @transform_0, window_bounds = array<i64: 1, 1, 32>}, {transform_indices = @transform_1, window_bounds = array<i64: 1, 4, 32>}, {transform_indices = @transform_2, window_bounds = array<i64: 1, 8, 32>}, {transform_indices = @transform_3, window_bounds = array<i64: 1, 3, 8>}, {pipeline_mode = #tpu.pipeline_mode<synchronous>, transform_indices = @transform_4, window_bounds = array<i64: 64, 192>}, {pipeline_mode = #tpu.pipeline_mode<synchronous>, transform_indices = @transform_5, window_bounds = array<i64: 1, 192>}, {pipeline_mode = #tpu.pipeline_mode<synchronous>, transform_indices = @transform_6, window_bounds = array<i64: 1, 32>}, {pipeline_mode = #tpu.pipeline_mode<synchronous>, transform_indices = @transform_7, window_bounds = array<i64: 1, 32>}, {pipeline_mode = #tpu.pipeline_mode<synchronous>, transform_indices = @transform_8, window_bounds = array<i64: 96, 33>}, {pipeline_mode = #tpu.pipeline_mode<synchronous>, transform_indices = @transform_9, window_bounds = array<i64: 1, 33>}, {transform_indices = @transform_10, window_bounds = array<i64: 1, 1, 32>}, {transform_indices = @transform_11, window_bounds = array<i64: 1, 1, 8>}, {transform_indices = @transform_12, window_bounds = array<i64: 1, 1, 32>}, {transform_indices = @transform_13, window_bounds = array<i64: 1, 1, 1>}]} {
    %c0 = arith.constant 0 : index
    %c0_0 = arith.constant 0 : index
    %c0_1 = arith.constant 0 : index
    %0 = vector.load %arg2[%c0, %c0_0, %c0_1] : memref<1x1x32xf32, #tpu.memory_space<vmem>>, vector<1x1x32xf32>
    %1 = vector.shape_cast %0 : vector<1x1x32xf32> to vector<1x32xf32>
    %c0_2 = arith.constant 0 : index
    %c0_3 = arith.constant 0 : index
    %c0_4 = arith.constant 0 : index
    %2 = vector.load %arg3[%c0_2, %c0_3, %c0_4] : memref<1x4x32xf32, #tpu.memory_space<vmem>>, vector<1x4x32xf32>
    %3 = vector.shape_cast %2 : vector<1x4x32xf32> to vector<4x32xf32>
    %c0_5 = arith.constant 0 : index
    %c0_6 = arith.constant 0 : index
    %c0_7 = arith.constant 0 : index
    %4 = vector.load %arg4[%c0_5, %c0_6, %c0_7] : memref<1x8x32xf32, #tpu.memory_space<vmem>>, vector<1x8x32xf32>
    %5 = vector.shape_cast %4 : vector<1x8x32xf32> to vector<8x32xf32>
    %c0_8 = arith.constant 0 : index
    %c0_9 = arith.constant 0 : index
    %c0_10 = arith.constant 0 : index
    %6 = vector.load %arg5[%c0_8, %c0_9, %c0_10] : memref<1x3x8xf32, #tpu.memory_space<vmem>>, vector<1x3x8xf32>
    %7 = vector.shape_cast %6 : vector<1x3x8xf32> to vector<3x8xf32>
    %8 = vector.extract_strided_slice %3 {offsets = [3, 0], sizes = [1, 32], strides = [1, 1]} : vector<4x32xf32> to vector<1x32xf32>
    %9 = tpu.concatenate %1, %8 in 1 : vector<1x32xf32>, vector<1x32xf32> -> vector<1x64xf32>
    %c0_11 = arith.constant 0 : index
    %c0_12 = arith.constant 0 : index
    %10 = vector.load %arg6[%c0_11, %c0_12] : memref<64x192xf32, #tpu.memory_space<vmem>>, vector<64x192xf32>
    %cst = arith.constant dense<0.000000e+00> : vector<1x192xf32>
    %11 = tpu.matmul %9, %10, %cst {dimension_numbers = #tpu.dot_dimension_numbers<[1], [0], [0], [1], [0, 0, 1, 1], [], []>} : vector<1x64xf32>, vector<64x192xf32>, vector<1x192xf32> -> vector<1x192xf32>
    %c0_13 = arith.constant 0 : index
    %c0_14 = arith.constant 0 : index
    %12 = vector.load %arg7[%c0_13, %c0_14] : memref<1x192xf32, #tpu.memory_space<vmem>>, vector<1x192xf32>
    %13 = arith.addf %11, %12 : vector<1x192xf32>
    %14 = vector.extract_strided_slice %13 {offsets = [0, 0], sizes = [1, 96], strides = [1, 1]} : vector<1x192xf32> to vector<1x96xf32>
    %15 = vector.extract_strided_slice %13 {offsets = [0, 96], sizes = [1, 96], strides = [1, 1]} : vector<1x192xf32> to vector<1x96xf32>
    %16 = vector.extract_strided_slice %14 {offsets = [0, 0], sizes = [1, 32], strides = [1, 1]} : vector<1x96xf32> to vector<1x32xf32>
    %17 = vector.extract_strided_slice %15 {offsets = [0, 0], sizes = [1, 32], strides = [1, 1]} : vector<1x96xf32> to vector<1x32xf32>
    %18 = arith.addf %16, %17 : vector<1x32xf32>
    %19 = arith.negf %18 : vector<1x32xf32>
    %20 = math.exp %19 : vector<1x32xf32>
    %cst_15 = arith.constant 1.000000e+00 : f32
    %21 = vector.broadcast %cst_15 : f32 to vector<1x32xf32>
    %22 = arith.addf %21, %20 : vector<1x32xf32>
    %23 = arith.divf %21, %22 : vector<1x32xf32>
    %24 = vector.extract_strided_slice %14 {offsets = [0, 32], sizes = [1, 32], strides = [1, 1]} : vector<1x96xf32> to vector<1x32xf32>
    %25 = vector.extract_strided_slice %15 {offsets = [0, 32], sizes = [1, 32], strides = [1, 1]} : vector<1x96xf32> to vector<1x32xf32>
    %26 = arith.addf %24, %25 : vector<1x32xf32>
    %27 = arith.negf %26 : vector<1x32xf32>
    %28 = math.exp %27 : vector<1x32xf32>
    %cst_16 = arith.constant 1.000000e+00 : f32
    %29 = vector.broadcast %cst_16 : f32 to vector<1x32xf32>
    %30 = arith.addf %29, %28 : vector<1x32xf32>
    %31 = arith.divf %29, %30 : vector<1x32xf32>
    %32 = vector.extract_strided_slice %14 {offsets = [0, 64], sizes = [1, 32], strides = [1, 1]} : vector<1x96xf32> to vector<1x32xf32>
    %33 = vector.extract_strided_slice %15 {offsets = [0, 64], sizes = [1, 32], strides = [1, 1]} : vector<1x96xf32> to vector<1x32xf32>
    %34 = arith.mulf %23, %33 : vector<1x32xf32>
    %35 = arith.addf %32, %34 : vector<1x32xf32>
    %36 = math.tanh %35 : vector<1x32xf32>
    %cst_17 = arith.constant 1.000000e+00 : f32
    %37 = vector.broadcast %cst_17 : f32 to vector<1x32xf32>
    %38 = arith.subf %37, %31 : vector<1x32xf32>
    %39 = arith.mulf %38, %36 : vector<1x32xf32>
    %40 = arith.mulf %31, %8 : vector<1x32xf32>
    %41 = arith.addf %39, %40 : vector<1x32xf32>
    %c0_18 = arith.constant 0 : index
    %c0_19 = arith.constant 0 : index
    %42 = vector.load %arg8[%c0_18, %c0_19] : memref<1x32xf32, #tpu.memory_space<vmem>>, vector<1x32xf32>
    %43 = arith.mulf %41, %42 : vector<1x32xf32>
    %cst_20 = arith.constant dense<0.000000e+00> : vector<1x8xf32>
    %44 = tpu.matmul %43, %5, %cst_20 {dimension_numbers = #tpu.dot_dimension_numbers<[1], [1], [0], [0], [0, 0, 1, 0], [], []>} : vector<1x32xf32>, vector<8x32xf32>, vector<1x8xf32> -> vector<1x8xf32>
    %45 = math.exp %7 : vector<3x8xf32>
    %cst_21 = arith.constant dense<0.000000e+00> : vector<8xf32>
    %46 = vector.multi_reduction <add>, %45, %cst_21 [0] : vector<3x8xf32> to vector<8xf32>
    %47 = vector.shape_cast %46 : vector<8xf32> to vector<1x8xf32>
    %48 = math.exp %44 : vector<1x8xf32>
    %49 = tpu.reciprocal %47 {approx = true} : vector<1x8xf32> -> vector<1x8xf32>
    %50 = arith.mulf %48, %49 : vector<1x8xf32>
    %cst_22 = arith.constant dense<0.000000e+00> : vector<1xf32>
    %51 = vector.multi_reduction <add>, %50, %cst_22 [1] : vector<1x8xf32> to vector<1xf32>
    %52 = vector.shape_cast %51 : vector<1xf32> to vector<1x1xf32>
    %53 = tpu.reciprocal %52 {approx = true} : vector<1x1xf32> -> vector<1x1xf32>
    %54 = vector.broadcast %53 : vector<1x1xf32> to vector<1x8xf32>
    %55 = arith.mulf %50, %54 : vector<1x8xf32>
    %cst_23 = arith.constant dense<0.000000e+00> : vector<1x32xf32>
    %56 = tpu.matmul %55, %5, %cst_23 {dimension_numbers = #tpu.dot_dimension_numbers<[1], [0], [0], [1], [0, 0, 1, 1], [], []>} : vector<1x8xf32>, vector<8x32xf32>, vector<1x32xf32> -> vector<1x32xf32>
    %c0_24 = arith.constant 0 : index
    %c0_25 = arith.constant 0 : index
    %57 = vector.load %arg9[%c0_24, %c0_25] : memref<1x32xf32, #tpu.memory_space<vmem>>, vector<1x32xf32>
    %58 = arith.mulf %41, %57 : vector<1x32xf32>
    %cst_26 = arith.constant dense<0.000000e+00> : vector<1x4xf32>
    %59 = tpu.matmul %58, %3, %cst_26 {dimension_numbers = #tpu.dot_dimension_numbers<[1], [1], [0], [0], [0, 0, 1, 0], [], []>} : vector<1x32xf32>, vector<4x32xf32>, vector<1x4xf32> -> vector<1x4xf32>
    %cst_27 = arith.constant dense<0xFF800000> : vector<1xf32>
    %60 = vector.multi_reduction <maximumf>, %59, %cst_27 [1] : vector<1x4xf32> to vector<1xf32>
    %61 = vector.shape_cast %60 : vector<1xf32> to vector<1x1xf32>
    %62 = vector.broadcast %61 : vector<1x1xf32> to vector<1x4xf32>
    %63 = arith.subf %59, %62 : vector<1x4xf32>
    %64 = math.exp %63 : vector<1x4xf32>
    %cst_28 = arith.constant dense<0.000000e+00> : vector<1xf32>
    %65 = vector.multi_reduction <add>, %64, %cst_28 [1] : vector<1x4xf32> to vector<1xf32>
    %66 = vector.shape_cast %65 : vector<1xf32> to vector<1x1xf32>
    %67 = tpu.reciprocal %66 {approx = true} : vector<1x1xf32> -> vector<1x1xf32>
    %68 = vector.broadcast %67 : vector<1x1xf32> to vector<1x4xf32>
    %69 = arith.mulf %64, %68 : vector<1x4xf32>
    %cst_29 = arith.constant dense<0.000000e+00> : vector<1x32xf32>
    %70 = tpu.matmul %69, %3, %cst_29 {dimension_numbers = #tpu.dot_dimension_numbers<[1], [0], [0], [1], [0, 0, 1, 1], [], []>} : vector<1x4xf32>, vector<4x32xf32>, vector<1x32xf32> -> vector<1x32xf32>
    %71 = tpu.concatenate %41, %56, %70 in 1 : vector<1x32xf32>, vector<1x32xf32>, vector<1x32xf32> -> vector<1x96xf32>
    %c0_30 = arith.constant 0 : index
    %c0_31 = arith.constant 0 : index
    %72 = vector.load %arg10[%c0_30, %c0_31] : memref<96x33xf32, #tpu.memory_space<vmem>>, vector<96x33xf32>
    %cst_32 = arith.constant dense<0.000000e+00> : vector<1x33xf32>
    %73 = tpu.matmul %71, %72, %cst_32 {dimension_numbers = #tpu.dot_dimension_numbers<[1], [0], [0], [1], [0, 0, 1, 1], [], []>} : vector<1x96xf32>, vector<96x33xf32>, vector<1x33xf32> -> vector<1x33xf32>
    %c0_33 = arith.constant 0 : index
    %c0_34 = arith.constant 0 : index
    %74 = vector.load %arg11[%c0_33, %c0_34] : memref<1x33xf32, #tpu.memory_space<vmem>>, vector<1x33xf32>
    %75 = arith.addf %73, %74 : vector<1x33xf32>
    %76 = vector.extract_strided_slice %75 {offsets = [0, 0], sizes = [1, 32], strides = [1, 1]} : vector<1x33xf32> to vector<1x32xf32>
    %77 = vector.extract_strided_slice %75 {offsets = [0, 32], sizes = [1, 1], strides = [1, 1]} : vector<1x33xf32> to vector<1x1xf32>
    %78 = arith.negf %77 : vector<1x1xf32>
    %79 = math.exp %78 : vector<1x1xf32>
    %cst_35 = arith.constant 1.000000e+00 : f32
    %80 = vector.broadcast %cst_35 : f32 to vector<1x1xf32>
    %81 = arith.addf %80, %79 : vector<1x1xf32>
    %82 = arith.divf %80, %81 : vector<1x1xf32>
    %83 = vector.shape_cast %41 : vector<1x32xf32> to vector<1x1x32xf32>
    %c0_36 = arith.constant 0 : index
    %c0_37 = arith.constant 0 : index
    %c0_38 = arith.constant 0 : index
    %84 = vector.load %arg12[%c0_36, %c0_37, %c0_38] : memref<1x1x32xf32, #tpu.memory_space<vmem>>, vector<1x1x32xf32>
    tpu.vector_store %arg12[%c0_36, %c0_37, %c0_38], %83 {strides = array<i32>} : memref<1x1x32xf32, #tpu.memory_space<vmem>>, vector<1x1x32xf32>,
    %85 = vector.shape_cast %55 : vector<1x8xf32> to vector<1x1x8xf32>
    %c0_39 = arith.constant 0 : index
    %c0_40 = arith.constant 0 : index
    %c0_41 = arith.constant 0 : index
    %86 = vector.load %arg13[%c0_39, %c0_40, %c0_41] : memref<1x1x8xf32, #tpu.memory_space<vmem>>, vector<1x1x8xf32>
    tpu.vector_store %arg13[%c0_39, %c0_40, %c0_41], %85 {strides = array<i32>} : memref<1x1x8xf32, #tpu.memory_space<vmem>>, vector<1x1x8xf32>,
    %87 = vector.shape_cast %76 : vector<1x32xf32> to vector<1x1x32xf32>
    %c0_42 = arith.constant 0 : index
    %c0_43 = arith.constant 0 : index
    %c0_44 = arith.constant 0 : index
    %88 = vector.load %arg14[%c0_42, %c0_43, %c0_44] : memref<1x1x32xf32, #tpu.memory_space<vmem>>, vector<1x1x32xf32>
    tpu.vector_store %arg14[%c0_42, %c0_43, %c0_44], %87 {strides = array<i32>} : memref<1x1x32xf32, #tpu.memory_space<vmem>>, vector<1x1x32xf32>,
    %89 = vector.shape_cast %82 : vector<1x1xf32> to vector<1x1x1xf32>
    %c0_45 = arith.constant 0 : index
    %c0_46 = arith.constant 0 : index
    %c0_47 = arith.constant 0 : index
    %90 = vector.load %arg15[%c0_45, %c0_46, %c0_47] : memref<1x1x1xf32, #tpu.memory_space<vmem>>, vector<1x1x1xf32>
    tpu.vector_store %arg15[%c0_45, %c0_46, %c0_47], %89 {strides = array<i32>} : memref<1x1x1xf32, #tpu.memory_space<vmem>>, vector<1x1x1xf32>,
    return
  }
  func.func @transform_0(%arg0: i32, %arg1: memref<2xi32, #tpu.memory_space<smem>>) -> (i32, i32, i32) {
    %0 = arith.index_cast %arg0 : i32 to index
    %1 = memref.load %arg1[%0] : memref<2xi32, #tpu.memory_space<smem>>
    %c0_i32 = arith.constant 0 : i32
    %c0_i32_0 = arith.constant 0 : i32
    %c0_i32_1 = arith.constant 0 : i32
    return %1, %c0_i32, %c0_i32_0 : i32, i32, i32
  }
  func.func @transform_1(%arg0: i32, %arg1: memref<2xi32, #tpu.memory_space<smem>>) -> (i32, i32, i32) {
    %c0_i32 = arith.constant 0 : i32
    %c0_i32_0 = arith.constant 0 : i32
    %c0_i32_1 = arith.constant 0 : i32
    return %arg0, %c0_i32, %c0_i32_0 : i32, i32, i32
  }
  func.func @transform_2(%arg0: i32, %arg1: memref<2xi32, #tpu.memory_space<smem>>) -> (i32, i32, i32) {
    %c0_i32 = arith.constant 0 : i32
    %c0_i32_0 = arith.constant 0 : i32
    %c0_i32_1 = arith.constant 0 : i32
    return %arg0, %c0_i32, %c0_i32_0 : i32, i32, i32
  }
  func.func @transform_3(%arg0: i32, %arg1: memref<2xi32, #tpu.memory_space<smem>>) -> (i32, i32, i32) {
    %c0_i32 = arith.constant 0 : i32
    %c0_i32_0 = arith.constant 0 : i32
    %c0_i32_1 = arith.constant 0 : i32
    return %arg0, %c0_i32, %c0_i32_0 : i32, i32, i32
  }
  func.func @transform_4(%arg0: i32, %arg1: memref<2xi32, #tpu.memory_space<smem>>) -> (i32, i32) {
    %c0_i32 = arith.constant 0 : i32
    %c0_i32_0 = arith.constant 0 : i32
    %c0_i32_1 = arith.constant 0 : i32
    return %c0_i32, %c0_i32_0 : i32, i32
  }
  func.func @transform_5(%arg0: i32, %arg1: memref<2xi32, #tpu.memory_space<smem>>) -> (i32, i32) {
    %c0_i32 = arith.constant 0 : i32
    %c0_i32_0 = arith.constant 0 : i32
    %c0_i32_1 = arith.constant 0 : i32
    return %c0_i32, %c0_i32_0 : i32, i32
  }
  func.func @transform_6(%arg0: i32, %arg1: memref<2xi32, #tpu.memory_space<smem>>) -> (i32, i32) {
    %c0_i32 = arith.constant 0 : i32
    %c0_i32_0 = arith.constant 0 : i32
    %c0_i32_1 = arith.constant 0 : i32
    return %c0_i32, %c0_i32_0 : i32, i32
  }
  func.func @transform_7(%arg0: i32, %arg1: memref<2xi32, #tpu.memory_space<smem>>) -> (i32, i32) {
    %c0_i32 = arith.constant 0 : i32
    %c0_i32_0 = arith.constant 0 : i32
    %c0_i32_1 = arith.constant 0 : i32
    return %c0_i32, %c0_i32_0 : i32, i32
  }
  func.func @transform_8(%arg0: i32, %arg1: memref<2xi32, #tpu.memory_space<smem>>) -> (i32, i32) {
    %c0_i32 = arith.constant 0 : i32
    %c0_i32_0 = arith.constant 0 : i32
    %c0_i32_1 = arith.constant 0 : i32
    return %c0_i32, %c0_i32_0 : i32, i32
  }
  func.func @transform_9(%arg0: i32, %arg1: memref<2xi32, #tpu.memory_space<smem>>) -> (i32, i32) {
    %c0_i32 = arith.constant 0 : i32
    %c0_i32_0 = arith.constant 0 : i32
    %c0_i32_1 = arith.constant 0 : i32
    return %c0_i32, %c0_i32_0 : i32, i32
  }
  func.func @transform_10(%arg0: i32, %arg1: memref<2xi32, #tpu.memory_space<smem>>) -> (i32, i32, i32) {
    %c0_i32 = arith.constant 0 : i32
    %c0_i32_0 = arith.constant 0 : i32
    %c0_i32_1 = arith.constant 0 : i32
    return %arg0, %c0_i32, %c0_i32_0 : i32, i32, i32
  }
  func.func @transform_11(%arg0: i32, %arg1: memref<2xi32, #tpu.memory_space<smem>>) -> (i32, i32, i32) {
    %c0_i32 = arith.constant 0 : i32
    %c0_i32_0 = arith.constant 0 : i32
    %c0_i32_1 = arith.constant 0 : i32
    return %arg0, %c0_i32, %c0_i32_0 : i32, i32, i32
  }
  func.func @transform_12(%arg0: i32, %arg1: memref<2xi32, #tpu.memory_space<smem>>) -> (i32, i32, i32) {
    %c0_i32 = arith.constant 0 : i32
    %c0_i32_0 = arith.constant 0 : i32
    %c0_i32_1 = arith.constant 0 : i32
    return %arg0, %c0_i32, %c0_i32_0 : i32, i32, i32
  }
  func.func @transform_13(%arg0: i32, %arg1: memref<2xi32, #tpu.memory_space<smem>>) -> (i32, i32, i32) {
    %c0_i32 = arith.constant 0 : i32
    %c0_i32_0 = arith.constant 0 : i32
    %c0_i32_1 = arith.constant 0 : i32
    return %arg0, %c0_i32, %c0_i32_0 : i32, i32, i32
  }
}

</mosaic_0001>

<llo_original>
// kernel: tpu_custom_call.1
$region0: #{tpu_custom_call.1}
  #allocation0 [shape = 'u32[]', space=smem, size = 0x4, offset = 0x4, fixed_abs, tag = 'smem constant byte address 0x4 - core index']
  #allocation1 [shape = 'u32[72,128]{1,0:T(1,128)}', space=vmem, size = 0x9000, scoped, tag = 'internal scratch']
  #allocation2 [shape = 's32[1]{0}', space=sflag, size = 0x4, scoped, tag = 'scoped memory for tpu_custom_call.1']
  #allocation3 [shape = 'u8[512]{0}', space=smem, size = 0x200, scoped, tag = 'prefetched SMEM operand 0']
  %s0 = inlined_call_operand.vmem [shape: s32[2], index: 0, kind: input, shape index: {}]
  %s1 = inlined_call_operand.vmem [shape: f32[50,1,32], index: 1, kind: input, shape index: {}]
  %s2 = inlined_call_operand.vmem [shape: f32[2,4,32], index: 2, kind: input, shape index: {}]
  %s3 = inlined_call_operand.vmem [shape: f32[2,8,32], index: 3, kind: input, shape index: {}]
  %s4 = inlined_call_operand.vmem [shape: f32[2,3,8], index: 4, kind: input, shape index: {}]
  %s5 = inlined_call_operand.vmem [shape: f32[64,192], index: 5, kind: input, shape index: {}]
  %s6 = inlined_call_operand.vmem [shape: f32[1,192], index: 6, kind: input, shape index: {}]
  %s7 = inlined_call_operand.vmem [shape: f32[1,32], index: 7, kind: input, shape index: {}]
  %s8 = inlined_call_operand.vmem [shape: f32[1,32], index: 8, kind: input, shape index: {}]
  %s9 = inlined_call_operand.vmem [shape: f32[96,33], index: 9, kind: input, shape index: {}]
  %s10 = inlined_call_operand.vmem [shape: f32[1,33], index: 10, kind: input, shape index: {}]
  %s11 = inlined_call_operand.hbm [shape: f32[2,1,32], index: 11, kind: output, shape index: {0}]
  %s12 = inlined_call_operand.hbm [shape: f32[2,1,8], index: 12, kind: output, shape index: {1}]
  %s13 = inlined_call_operand.hbm [shape: f32[2,1,32], index: 13, kind: output, shape index: {2}]
  %s14 = inlined_call_operand.vmem [shape: f32[2,1,1], index: 14, kind: output, shape index: {3}]
  %15 = xla_tuple %s11, %s12, %s13, %s14
  %s16 = sld [smem:[#allocation0]]
  $region97: #{tpu_custom_call.1} parent=0
    _
  %s18 = ssub.s32 1, %s16
  %s19 = scalar_select 0, %s18, %s16
  %s21 = sshll.u32 %s0, 4
  %s22 = int_to_ptr.vmem [resolvable:$true] %s21
  %24 = dma.vmem_to_smem %s22, 16, [#allocation3], [#allocation2]
  %26 = dma.done [#allocation2], 16
  %27 = sfence
  $region1: #{tpu_custom_call.1} parent=0
    #allocation4 [shape = 'u8[1024]{0}', space=vmem, size = 0x400, scoped, tag = 'output window, operand 0']
    #allocation5 [shape = 's32[2]{0}', space=sflag, size = 0x8, scoped, tag = 'scoped memory for tpu_custom_call.1']
    #allocation6 [shape = 'u8[1024]{0}', space=vmem, size = 0x400, scoped, tag = 'output window, operand 1']
    #allocation7 [shape = 's32[2]{0}', space=sflag, size = 0x8, scoped, tag = 'scoped memory for tpu_custom_call.1']
    #allocation8 [shape = 'u8[1024]{0}', space=vmem, size = 0x400, scoped, tag = 'output window, operand 2']
    %28 = vsyncpa [#allocation5], 0
    %s29 = scalar_lea.sflag [#allocation5], 1
    %30 = vsyncpa %s29, 0
    %31 = vsyncpa [#allocation7], 0
    %s32 = scalar_lea.sflag [#allocation7], 1
    %33 = vsyncpa %s32, 0
    loop: start=0, step=1, limit=4
    $region2: #{tpu_custom_call.1} parent=1 // loop_pre_header
      _
    $region3: #{tpu_custom_call.1} parent=1 // loop_header
      %s35 = sphi 0, %s39
      %p36 = scmp.ge.s32.totalorder %s35, 4
      %s47 = sphi 0, %s49
      %s50 = sphi 0, %s47
      %s51 = sphi 0, %s50
      %s67 = sphi 0, %s51
      %s73 = sphi 0, %s75
      %s76 = sphi 0, %s73
      %s77 = sphi 0, %s76
      %s93 = sphi 0, %s77
      %s99 = sphi 0, %s101
      %s102 = sphi 0, %s99
      %s103 = sphi 0, %s102
      %s119 = sphi 0, %s103
      %s125 = sphi 0, %s127
      %s128 = sphi 0, %s125
      %s129 = sphi 0, %s128
      %s145 = sphi 0, %s129
      %s149 = sphi 0, %s149
      %s151 = sphi 0, %s149
      %s152 = sphi 0, %s151
      %s166 = sphi 0, %s152
      %s170 = sphi 0, %s170
      %s172 = sphi 0, %s170
      %s173 = sphi 0, %s172
      %s187 = sphi 0, %s173
      %s191 = sphi 0, %s191
      %s193 = sphi 0, %s191
      %s194 = sphi 0, %s193
      %s208 = sphi 0, %s194
      %s212 = sphi 0, %s212
      %s214 = sphi 0, %s212
      %s215 = sphi 0, %s214
      %s229 = sphi 0, %s215
      %s233 = sphi 0, %s233
      %s235 = sphi 0, %s233
      %s236 = sphi 0, %s235
      %s250 = sphi 0, %s236
      %s254 = sphi 0, %s254
      %s256 = sphi 0, %s254
      %s257 = sphi 0, %s256
      %s271 = sphi 0, %s257
      %s277 = sphi 0, %s279
      %s280 = sphi 0, %s277
      %s281 = sphi 0, %s280
      %s297 = sphi 0, %s281
      %s303 = sphi 0, %s305
      %s306 = sphi 0, %s303
      %s307 = sphi 0, %s306
      %s323 = sphi 0, %s307
      %s329 = sphi 0, %s331
      %s332 = sphi 0, %s329
      %s333 = sphi 0, %s332
      %s349 = sphi 0, %s333
      %s355 = sphi 0, %s357
      %s358 = sphi 0, %s355
      %s359 = sphi 0, %s358
      %s375 = sphi 0, %s359
    $region4: #{tpu_custom_call.1} parent=1 // loop_header_branch
      %38 = sbr.rel (%p36) target = $region8
    $region5: #{tpu_custom_call.1} parent=1 // loop_body
      %s40 = ssub.s32 %s35, 1
      %s41 = ssub.s32 %s35, 2
      %s42 = sadd.s32 %s35, 1
      %s43 = sld [smem:[#allocation3 + %s35]]
      %s44 = sld [smem:[#allocation3 + %s42]]
      %s45 = ssub.s32 %s43, %s44
      %p46 = scmp.eq.s32.totalorder %s45, 0
      %s48 = sadd.s32 %s47, 1
      %s49 = scalar_select %p46, %s47, %s48
      %p52 = pneg %p46
      %p53 = scmp.eq.s32.totalorder %s35, 1
      %p54 = por %p52, %p53
      %p55 = scmp.ne.s32.totalorder %s47, %s50
      %p56 = scmp.eq.s32.totalorder %s35, 0
      %p57 = por %p55, %p56
      %p58 = scmp.ne.s32.totalorder %s47, %s50
      %p59 = scmp.eq.s32.totalorder %s40, 1
      %p60 = por %p58, %p59
      %p61 = scmp.ne.s32.totalorder %s50, %s51
      %p62 = scmp.eq.s32.totalorder %s40, 0
      %p63 = por %p61, %p62
      %p64 = scmp.ne.s32.totalorder %s50, %s51
      %p65 = scmp.eq.s32.totalorder %s41, 1
      %p66 = por %p64, %p65
      %p68 = scmp.ne.s32.totalorder %s51, %s67
      %p69 = scmp.eq.s32.totalorder %s41, 0
      %p70 = por %p68, %p69
      %s71 = ssub.s32 %s35, %s42
      %p72 = scmp.eq.s32.totalorder %s71, 0
      %s74 = sadd.s32 %s73, 1
      %s75 = scalar_select %p72, %s73, %s74
      %p78 = pneg %p72
      %p79 = scmp.eq.s32.totalorder %s35, 1
      %p80 = por %p78, %p79
      %p81 = scmp.ne.s32.totalorder %s73, %s76
      %p82 = scmp.eq.s32.totalorder %s35, 0
      %p83 = por %p81, %p82
      %p84 = scmp.ne.s32.totalorder %s73, %s76
      %p85 = scmp.eq.s32.totalorder %s40, 1
      %p86 = por %p84, %p85
      %p87 = scmp.ne.s32.totalorder %s76, %s77
      %p88 = scmp.eq.s32.totalorder %s40, 0
      %p89 = por %p87, %p88
      %p90 = scmp.ne.s32.totalorder %s76, %s77
      %p91 = scmp.eq.s32.totalorder %s41, 1
      %p92 = por %p90, %p91
      %p94 = scmp.ne.s32.totalorder %s77, %s93
      %p95 = scmp.eq.s32.totalorder %s41, 0
      %p96 = por %p94, %p95
      %s97 = ssub.s32 %s35, %s42
      %p98 = scmp.eq.s32.totalorder %s97, 0
      %s100 = sadd.s32 %s99, 1
      %s101 = scalar_select %p98, %s99, %s100
      %p104 = pneg %p98
      %p105 = scmp.eq.s32.totalorder %s35, 1
      %p106 = por %p104, %p105
      %p107 = scmp.ne.s32.totalorder %s99, %s102
      %p108 = scmp.eq.s32.totalorder %s35, 0
      %p109 = por %p107, %p108
      %p110 = scmp.ne.s32.totalorder %s99, %s102
      %p111 = scmp.eq.s32.totalorder %s40, 1
      %p112 = por %p110, %p111
      %p113 = scmp.ne.s32.totalorder %s102, %s103
      %p114 = scmp.eq.s32.totalorder %s40, 0
      %p115 = por %p113, %p114
      %p116 = scmp.ne.s32.totalorder %s102, %s103
      %p117 = scmp.eq.s32.totalorder %s41, 1
      %p118 = por %p116, %p117
      %p120 = scmp.ne.s32.totalorder %s103, %s119
      %p121 = scmp.eq.s32.totalorder %s41, 0
      %p122 = por %p120, %p121
      %s123 = ssub.s32 %s35, %s42
      %p124 = scmp.eq.s32.totalorder %s123, 0
      %s126 = sadd.s32 %s125, 1
      %s127 = scalar_select %p124, %s125, %s126
      %p130 = pneg %p124
      %p131 = scmp.eq.s32.totalorder %s35, 1
      %p132 = por %p130, %p131
      %p133 = scmp.ne.s32.totalorder %s125, %s128
      %p134 = scmp.eq.s32.totalorder %s35, 0
      %p135 = por %p133, %p134
      %p136 = scmp.ne.s32.totalorder %s125, %s128
      %p137 = scmp.eq.s32.totalorder %s40, 1
      %p138 = por %p136, %p137
      %p139 = scmp.ne.s32.totalorder %s128, %s129
      %p140 = scmp.eq.s32.totalorder %s40, 0
      %p141 = por %p139, %p140
      %p142 = scmp.ne.s32.totalorder %s128, %s129
      %p143 = scmp.eq.s32.totalorder %s41, 1
      %p144 = por %p142, %p143
      %p146 = scmp.ne.s32.totalorder %s129, %s145
      %p147 = scmp.eq.s32.totalorder %s41, 0
      %p148 = por %p146, %p147
      %s150 = sadd.s32 %s149, 1
      %p153 = scmp.eq.s32.totalorder %s35, 1
      %p154 = scmp.ne.s32.totalorder %s149, %s151
      %p155 = scmp.eq.s32.totalorder %s35, 0
      %p156 = por %p154, %p155
      %p157 = scmp.ne.s32.totalorder %s149, %s151
      %p158 = scmp.eq.s32.totalorder %s40, 1
      %p159 = por %p157, %p158
      %p160 = scmp.ne.s32.totalorder %s151, %s152
      %p161 = scmp.eq.s32.totalorder %s40, 0
      %p162 = por %p160, %p161
      %p163 = scmp.ne.s32.totalorder %s151, %s152
      %p164 = scmp.eq.s32.totalorder %s41, 1
      %p165 = por %p163, %p164
      %p167 = scmp.ne.s32.totalorder %s152, %s166
      %p168 = scmp.eq.s32.totalorder %s41, 0
      %p169 = por %p167, %p168
      %s171 = sadd.s32 %s170, 1
      %p174 = scmp.eq.s32.totalorder %s35, 1
      %p175 = scmp.ne.s32.totalorder %s170, %s172
      %p176 = scmp.eq.s32.totalorder %s35, 0
      %p177 = por %p175, %p176
      %p178 = scmp.ne.s32.totalorder %s170, %s172
      %p179 = scmp.eq.s32.totalorder %s40, 1
      %p180 = por %p178, %p179
      %p181 = scmp.ne.s32.totalorder %s172, %s173
      %p182 = scmp.eq.s32.totalorder %s40, 0
      %p183 = por %p181, %p182
      %p184 = scmp.ne.s32.totalorder %s172, %s173
      %p185 = scmp.eq.s32.totalorder %s41, 1
      %p186 = por %p184, %p185
      %p188 = scmp.ne.s32.totalorder %s173, %s187
      %p189 = scmp.eq.s32.totalorder %s41, 0
      %p190 = por %p188, %p189
      %s192 = sadd.s32 %s191, 1
      %p195 = scmp.eq.s32.totalorder %s35, 1
      %p196 = scmp.ne.s32.totalorder %s191, %s193
      %p197 = scmp.eq.s32.totalorder %s35, 0
      %p198 = por %p196, %p197
      %p199 = scmp.ne.s32.totalorder %s191, %s193
      %p200 = scmp.eq.s32.totalorder %s40, 1
      %p201 = por %p199, %p200
      %p202 = scmp.ne.s32.totalorder %s193, %s194
      %p203 = scmp.eq.s32.totalorder %s40, 0
      %p204 = por %p202, %p203
      %p205 = scmp.ne.s32.totalorder %s193, %s194
      %p206 = scmp.eq.s32.totalorder %s41, 1
      %p207 = por %p205, %p206
      %p209 = scmp.ne.s32.totalorder %s194, %s208
      %p210 = scmp.eq.s32.totalorder %s41, 0
      %p211 = por %p209, %p210
      %s213 = sadd.s32 %s212, 1
      %p216 = scmp.eq.s32.totalorder %s35, 1
      %p217 = scmp.ne.s32.totalorder %s212, %s214
      %p218 = scmp.eq.s32.totalorder %s35, 0
      %p219 = por %p217, %p218
      %p220 = scmp.ne.s32.totalorder %s212, %s214
      %p221 = scmp.eq.s32.totalorder %s40, 1
      %p222 = por %p220, %p221
      %p223 = scmp.ne.s32.totalorder %s214, %s215
      %p224 = scmp.eq.s32.totalorder %s40, 0
      %p225 = por %p223, %p224
      %p226 = scmp.ne.s32.totalorder %s214, %s215
      %p227 = scmp.eq.s32.totalorder %s41, 1
      %p228 = por %p226, %p227
      %p230 = scmp.ne.s32.totalorder %s215, %s229
      %p231 = scmp.eq.s32.totalorder %s41, 0
      %p232 = por %p230, %p231
      %s234 = sadd.s32 %s233, 1
      %p237 = scmp.eq.s32.totalorder %s35, 1
      %p238 = scmp.ne.s32.totalorder %s233, %s235
      %p239 = scmp.eq.s32.totalorder %s35, 0
      %p240 = por %p238, %p239
      %p241 = scmp.ne.s32.totalorder %s233, %s235
      %p242 = scmp.eq.s32.totalorder %s40, 1
      %p243 = por %p241, %p242
      %p244 = scmp.ne.s32.totalorder %s235, %s236
      %p245 = scmp.eq.s32.totalorder %s40, 0
      %p246 = por %p244, %p245
      %p247 = scmp.ne.s32.totalorder %s235, %s236
      %p248 = scmp.eq.s32.totalorder %s41, 1
      %p249 = por %p247, %p248
      %p251 = scmp.ne.s32.totalorder %s236, %s250
      %p252 = scmp.eq.s32.totalorder %s41, 0
      %p253 = por %p251, %p252
      %s255 = sadd.s32 %s254, 1
      %p258 = scmp.eq.s32.totalorder %s35, 1
      %p259 = scmp.ne.s32.totalorder %s254, %s256
      %p260 = scmp.eq.s32.totalorder %s35, 0
      %p261 = por %p259, %p260
      %p262 = scmp.ne.s32.totalorder %s254, %s256
      %p263 = scmp.eq.s32.totalorder %s40, 1
      %p264 = por %p262, %p263
      %p265 = scmp.ne.s32.totalorder %s256, %s257
      %p266 = scmp.eq.s32.totalorder %s40, 0
      %p267 = por %p265, %p266
      %p268 = scmp.ne.s32.totalorder %s256, %s257
      %p269 = scmp.eq.s32.totalorder %s41, 1
      %p270 = por %p268, %p269
      %p272 = scmp.ne.s32.totalorder %s257, %s271
      %p273 = scmp.eq.s32.totalorder %s41, 0
      %p274 = por %p272, %p273
      %s275 = ssub.s32 %s35, %s42
      %p276 = scmp.eq.s32.totalorder %s275, 0
      %s278 = sadd.s32 %s277, 1
      %s279 = scalar_select %p276, %s277, %s278
      %p282 = pneg %p276
      %p283 = scmp.eq.s32.totalorder %s35, 1
      %p284 = por %p282, %p283
      %p285 = scmp.ne.s32.totalorder %s277, %s280
      %p286 = scmp.eq.s32.totalorder %s35, 0
      %p287 = por %p285, %p286
      %p288 = scmp.ne.s32.totalorder %s277, %s280
      %p289 = scmp.eq.s32.totalorder %s40, 1
      %p290 = por %p288, %p289
      %p291 = scmp.ne.s32.totalorder %s280, %s281
      %p292 = scmp.eq.s32.totalorder %s40, 0
      %p293 = por %p291, %p292
      %p294 = scmp.ne.s32.totalorder %s280, %s281
      %p295 = scmp.eq.s32.totalorder %s41, 1
      %p296 = por %p294, %p295
      %p298 = scmp.ne.s32.totalorder %s281, %s297
      %p299 = scmp.eq.s32.totalorder %s41, 0
      %p300 = por %p298, %p299
      %s301 = ssub.s32 %s35, %s42
      %p302 = scmp.eq.s32.totalorder %s301, 0
      %s304 = sadd.s32 %s303, 1
      %s305 = scalar_select %p302, %s303, %s304
      %p308 = pneg %p302
      %p309 = scmp.eq.s32.totalorder %s35, 1
      %p310 = por %p308, %p309
      %p311 = scmp.ne.s32.totalorder %s303, %s306
      %p312 = scmp.eq.s32.totalorder %s35, 0
      %p313 = por %p311, %p312
      %p314 = scmp.ne.s32.totalorder %s303, %s306
      %p315 = scmp.eq.s32.totalorder %s40, 1
      %p316 = por %p314, %p315
      %p317 = scmp.ne.s32.totalorder %s306, %s307
      %p318 = scmp.eq.s32.totalorder %s40, 0
      %p319 = por %p317, %p318
      %p320 = scmp.ne.s32.totalorder %s306, %s307
      %p321 = scmp.eq.s32.totalorder %s41, 1
      %p322 = por %p320, %p321
      %p324 = scmp.ne.s32.totalorder %s307, %s323
      %p325 = scmp.eq.s32.totalorder %s41, 0
      %p326 = por %p324, %p325
      %s327 = ssub.s32 %s35, %s42
      %p328 = scmp.eq.s32.totalorder %s327, 0
      %s330 = sadd.s32 %s329, 1
      %s331 = scalar_select %p328, %s329, %s330
      %p334 = pneg %p328
      %p335 = scmp.eq.s32.totalorder %s35, 1
      %p336 = por %p334, %p335
      %p337 = scmp.ne.s32.totalorder %s329, %s332
      %p338 = scmp.eq.s32.totalorder %s35, 0
      %p339 = por %p337, %p338
      %p340 = scmp.ne.s32.totalorder %s329, %s332
      %p341 = scmp.eq.s32.totalorder %s40, 1
      %p342 = por %p340, %p341
      %p343 = scmp.ne.s32.totalorder %s332, %s333
      %p344 = scmp.eq.s32.totalorder %s40, 0
      %p345 = por %p343, %p344
      %p346 = scmp.ne.s32.totalorder %s332, %s333
      %p347 = scmp.eq.s32.totalorder %s41, 1
      %p348 = por %p346, %p347
      %p350 = scmp.ne.s32.totalorder %s333, %s349
      %p351 = scmp.eq.s32.totalorder %s41, 0
      %p352 = por %p350, %p351
      %s353 = ssub.s32 %s35, %s42
      %p354 = scmp.eq.s32.totalorder %s353, 0
      %s356 = sadd.s32 %s355, 1
      %s357 = scalar_select %p354, %s355, %s356
      %p360 = pneg %p354
      %p361 = scmp.eq.s32.totalorder %s35, 1
      %p362 = por %p360, %p361
      %p363 = scmp.ne.s32.totalorder %s355, %s358
      %p364 = scmp.eq.s32.totalorder %s35, 0
      %p365 = por %p363, %p364
      %p366 = scmp.ne.s32.totalorder %s355, %s358
      %p367 = scmp.eq.s32.totalorder %s40, 1
      %p368 = por %p366, %p367
      %p369 = scmp.ne.s32.totalorder %s358, %s359
      %p370 = scmp.eq.s32.totalorder %s40, 0
      %p371 = por %p369, %p370
      %p372 = scmp.ne.s32.totalorder %s358, %s359
      %p373 = scmp.eq.s32.totalorder %s41, 1
      %p374 = por %p372, %p373
      %p376 = scmp.ne.s32.totalorder %s359, %s375
      %p377 = scmp.eq.s32.totalorder %s41, 0
      %p378 = por %p376, %p377
      %p379 = scmp.le.s32.totalorder 1, %s35
      %p380 = scmp.lt.s32.totalorder %s35, 3
      %p381 = pnand %p379, %p380
      %p382 = pneg %p381
      // Predicated region
      $region9: #{tpu_custom_call.1} parent=5 // pred_check
        _
      $region10: #{tpu_custom_call.1} parent=5 // pred_check_branch
        %384 = sbr.rel (%p381) target = $region12
      $region11: #{tpu_custom_call.1} parent=5 // pred_region
        %s385 = ssub.s32 %s35, 1
        // Predicated region
        $region13: #{tpu_custom_call.1} parent=11 // pred_check
          %p386 = pneg %p162
        $region14: #{tpu_custom_call.1} parent=11 // pred_check_branch
          %388 = sbr.rel (%p386) target = $region16
        $region15: #{tpu_custom_call.1} parent=11 // pred_region
          _
        $region16: #{tpu_custom_call.1} parent=11 // pred_fallthru
          _
        // Predicated region
        $region17: #{tpu_custom_call.1} parent=11 // pred_check
          %p389 = pneg %p183
        $region18: #{tpu_custom_call.1} parent=11 // pred_check_branch
          %391 = sbr.rel (%p389) target = $region20
        $region19: #{tpu_custom_call.1} parent=11 // pred_region
          _
        $region20: #{tpu_custom_call.1} parent=11 // pred_fallthru
          _
        // Predicated region
        $region21: #{tpu_custom_call.1} parent=11 // pred_check
          %p392 = pneg %p204
        $region22: #{tpu_custom_call.1} parent=11 // pred_check_branch
          %394 = sbr.rel (%p392) target = $region24
        $region23: #{tpu_custom_call.1} parent=11 // pred_region
          _
        $region24: #{tpu_custom_call.1} parent=11 // pred_fallthru
          _
        // Predicated region
        $region25: #{tpu_custom_call.1} parent=11 // pred_check
          %p395 = pneg %p225
        $region26: #{tpu_custom_call.1} parent=11 // pred_check_branch
          %397 = sbr.rel (%p395) target = $region28
        $region27: #{tpu_custom_call.1} parent=11 // pred_region
          _
        $region28: #{tpu_custom_call.1} parent=11 // pred_fallthru
          _
        // Predicated region
        $region29: #{tpu_custom_call.1} parent=11 // pred_check
          %p398 = pneg %p246
        $region30: #{tpu_custom_call.1} parent=11 // pred_check_branch
          %400 = sbr.rel (%p398) target = $region32
        $region31: #{tpu_custom_call.1} parent=11 // pred_region
          _
        $region32: #{tpu_custom_call.1} parent=11 // pred_fallthru
          _
        // Predicated region
        $region33: #{tpu_custom_call.1} parent=11 // pred_check
          %p401 = pneg %p267
        $region34: #{tpu_custom_call.1} parent=11 // pred_check_branch
          %403 = sbr.rel (%p401) target = $region36
        $region35: #{tpu_custom_call.1} parent=11 // pred_region
          _
        $region36: #{tpu_custom_call.1} parent=11 // pred_fallthru
          _
      $region12: #{tpu_custom_call.1} parent=5 // pred_fallthru
        _
      %p404 = scmp.lt.s32.totalorder %s35, 2
      // Predicated region
      $region37: #{tpu_custom_call.1} parent=5 // pred_check
        %p405 = pneg %p404
      $region38: #{tpu_custom_call.1} parent=5 // pred_check_branch
        %407 = sbr.rel (%p405) target = $region40
      $region39: #{tpu_custom_call.1} parent=5 // pred_region
        // Predicated region
        $region41: #{tpu_custom_call.1} parent=39 // pred_check
          %p408 = pneg %p57
        $region42: #{tpu_custom_call.1} parent=39 // pred_check_branch
          %410 = sbr.rel (%p408) target = $region44
        $region43: #{tpu_custom_call.1} parent=39 // pred_region
          %s411 = sld [smem:[#allocation3 + %s35]]
          %p412 = scmp.lt.s32.totalorder %s411, 49
          %s413 = scalar_select %p412, %s411, 49
          %s414 = scalar_lea.vmem %s1, %s413
          %s415 = sld [smem:[#allocation3 + %s35]]
        $region44: #{tpu_custom_call.1} parent=39 // pred_fallthru
          _
        // Predicated region
        $region45: #{tpu_custom_call.1} parent=39 // pred_check
          %p416 = pneg %p83
        $region46: #{tpu_custom_call.1} parent=39 // pred_check_branch
          %418 = sbr.rel (%p416) target = $region48
        $region47: #{tpu_custom_call.1} parent=39 // pred_region
          %p419 = scmp.lt.s32.totalorder %s35, 1
          %s420 = scalar_select %p419, %s35, 1
          %s421 = smul.addr %s420, 4
          %s422 = scalar_lea.vmem %s2, %s421
        $region48: #{tpu_custom_call.1} parent=39 // pred_fallthru
          _
        // Predicated region
        $region49: #{tpu_custom_call.1} parent=39 // pred_check
          %p423 = pneg %p109
        $region50: #{tpu_custom_call.1} parent=39 // pred_check_branch
          %425 = sbr.rel (%p423) target = $region52
        $region51: #{tpu_custom_call.1} parent=39 // pred_region
          %p426 = scmp.lt.s32.totalorder %s35, 1
          %s427 = scalar_select %p426, %s35, 1
          %s428 = smul.addr %s427, 8
          %s429 = scalar_lea.vmem %s3, %s428
        $region52: #{tpu_custom_call.1} parent=39 // pred_fallthru
          _
        // Predicated region
        $region53: #{tpu_custom_call.1} parent=39 // pred_check
          %p430 = pneg %p135
        $region54: #{tpu_custom_call.1} parent=39 // pred_check_branch
          %432 = sbr.rel (%p430) target = $region56
        $region55: #{tpu_custom_call.1} parent=39 // pred_region
          %p433 = scmp.lt.s32.totalorder %s35, 1
          %s434 = scalar_select %p433, %s35, 1
          %s435 = smul.addr %s434, 4
          %s436 = scalar_lea.vmem %s4, %s435
        $region56: #{tpu_custom_call.1} parent=39 // pred_fallthru
          _
      $region40: #{tpu_custom_call.1} parent=5 // pred_fallthru
        _
      %p437 = scmp.le.s32.totalorder 1, %s35
      %p438 = scmp.lt.s32.totalorder %s35, 3
      %p439 = pnand %p437, %p438
      %p440 = pneg %p439
      // Predicated region
      $region57: #{tpu_custom_call.1} parent=5 // pred_check
        _
      $region58: #{tpu_custom_call.1} parent=5 // pred_check_branch
        %442 = sbr.rel (%p439) target = $region60
      $region59: #{tpu_custom_call.1} parent=5 // pred_region
        %s443 = ssub.s32 %s35, 1
        %s444 = sld [smem:[#allocation3 + %s40]]
        %p445 = scmp.lt.s32.totalorder %s444, 49
        %s446 = scalar_select %p445, %s444, 49
        %s447 = scalar_lea.vmem %s1, %s446
        %p448 = pneg %p63
        %p449 = pneg %p60
        %p450 = scmp.lt.s32.totalorder %s40, 1
        %s451 = scalar_select %p450, %s40, 1
        %s452 = smul.addr %s451, 4
        %s453 = scalar_lea.vmem %s2, %s452
        %p454 = pneg %p89
        %p455 = pneg %p86
        %p456 = scmp.lt.s32.totalorder %s40, 1
        %s457 = scalar_select %p456, %s40, 1
        %s458 = smul.addr %s457, 8
        %s459 = scalar_lea.vmem %s3, %s458
        %p460 = pneg %p115
        %p461 = pneg %p112
        %p462 = scmp.lt.s32.totalorder %s40, 1
        %s463 = scalar_select %p462, %s40, 1
        %s464 = smul.addr %s463, 4
        %s465 = scalar_lea.vmem %s4, %s464
        %p466 = pneg %p141
        %p467 = pneg %p138
        %p468 = pneg %p162
        %p469 = pneg %p159
        %p470 = pneg %p183
        %p471 = pneg %p180
        %p472 = pneg %p204
        %p473 = pneg %p201
        %p474 = pneg %p225
        %p475 = pneg %p222
        %p476 = pneg %p246
        %p477 = pneg %p243
        %p478 = pneg %p267
        %p479 = pneg %p264
        %p480 = pneg %p293
        %p481 = pneg %p290
        %s482 = sand.u32 %s280, 1
        %s483 = scalar_lea.sflag [#allocation5], %s482
        %s484 = sand.u32 %s280, 1
        %s485 = scalar_lea.vmem [#allocation4], %s484
        %p486 = pneg %p319
        %p487 = pneg %p316
        %s488 = sand.u32 %s40, 1
        %s489 = scalar_lea.sflag [#allocation7], %s488
        %s490 = sand.u32 %s306, 1
        %s491 = scalar_lea.vmem [#allocation6], %s490
        %p492 = pneg %p345
        %p493 = pneg %p342
        %s494 = sand.u32 %s40, 1
        %s495 = scalar_lea.sflag [#allocation7], %s494
        %s496 = sand.u32 %s332, 1
        %s497 = scalar_lea.vmem [#allocation8], %s496
        %p498 = pneg %p371
        %p499 = pneg %p368
        %p500 = scmp.lt.s32.totalorder %s40, 1
        %s501 = scalar_select %p500, %s40, 1
        %s502 = scalar_lea.vmem %s14, %s501
        %s503 = sld [smem:[#allocation3 + %s40]]
        %p504 = scmp.lt.s32.totalorder %s503, 49
        %s505 = scalar_select %p504, %s503, 49
        %s506 = scalar_lea.vmem %s1, %s505
        %s507 = sld [smem:[#allocation3 + %s40]]
        %p508 = scmp.lt.s32.totalorder %s40, 1
        %s509 = scalar_select %p508, %s40, 1
        %s510 = smul.addr %s509, 4
        %s511 = scalar_lea.vmem %s2, %s510
        %p512 = scmp.lt.s32.totalorder %s40, 1
        %s513 = scalar_select %p512, %s40, 1
        %s514 = smul.addr %s513, 8
        %s515 = scalar_lea.vmem %s3, %s514
        %p516 = scmp.lt.s32.totalorder %s40, 1
        %s517 = scalar_select %p516, %s40, 1
        %s518 = smul.addr %s517, 4
        %s519 = scalar_lea.vmem %s4, %s518
        %p520 = scmp.lt.s32.totalorder %s40, 1
        %s521 = scalar_select %p520, %s40, 1
        %s522 = scalar_lea.vmem %s14, %s521
        %v523 = vld [vmem:[%s506] sm:$0x1]
        %v524 = vld [vmem:[%s511] sm:$0xf]
        %v525 = vld [vmem:[%s515] sm:$0xff]
        %v526 = vld [vmem:[%s519] sm:$0x7]
        %v528 = vrot.slane %v524, 3
        %529 = vrot.lane.b32.xlu0 %v528, 32
        %v530 = vpop.permute.xlu0 %529
        %vm532 = vcmask 261120
        %v533 = vsel %vm532, %v523, %v530
        %v534 = vld [vmem:[%s5] sm:$0xff]
        %v535 = vld [vmem:[%s5 + $0x8] sm:$0xff]
        %v536 = vld [vmem:[%s5 + $0x10] sm:$0xff]
        %v537 = vld [vmem:[%s5 + $0x18] sm:$0xff]
        %v538 = vld [vmem:[%s5 + $0x20] sm:$0xff]
        %v539 = vld [vmem:[%s5 + $0x28] sm:$0xff]
        %v540 = vld [vmem:[%s5 + $0x30] sm:$0xff]
        %v541 = vld [vmem:[%s5 + $0x38] sm:$0xff]
        %v542 = vld [vmem:[%s5 + $0x40] sm:$0xff]
        %v543 = vld [vmem:[%s5 + $0x48] sm:$0xff]
        %v544 = vld [vmem:[%s5 + $0x50] sm:$0xff]
        %v545 = vld [vmem:[%s5 + $0x58] sm:$0xff]
        %v546 = vld [vmem:[%s5 + $0x60] sm:$0xff]
        %v547 = vld [vmem:[%s5 + $0x68] sm:$0xff]
        %v548 = vld [vmem:[%s5 + $0x70] sm:$0xff]
        %v549 = vld [vmem:[%s5 + $0x78] sm:$0xff]
        %v550 = vld [vmem:[%s6] sm:$0x3]
        %v552 = vperm.slane %v550, 0
        %v553 = vperm.slane %v550, 1
        %vm556 = vcmask 523264
        %v558 = vsel %vm556, %v533, 0
        %560 = vmatpush.msra.mxu0 0.0
        %561 = vmatpush.msra.mxu0 0.0
        %562 = vmatpush.msra.mxu0 0.0
        %563 = vmatpush.msra.mxu0 0.0
        %564 = vmatpush.msra.mxu0 0.0
        %565 = vmatpush.msra.mxu0 0.0
        %566 = vmatpush.msra.mxu0 0.0
        %567 = vmatpush.msra.mxu0 0.0
        %568 = vmatpush.msra.mxu0 %v548
        %569 = vmatpush.msra.mxu0 %v546
        %570 = vmatpush.msra.mxu0 %v544
        %571 = vmatpush.msra.mxu0 %v542
        %572 = vmatpush.msra.mxu0 %v540
        %573 = vmatpush.msra.mxu0 %v538
        %574 = vmatpush.msra.mxu0 %v536
        %575 = vmatpush.msra.mxu0 %v534
        %576 = vmatmul.f32.gmra.mxu0 %v558
        %v577 = vpop.f32.mrf.mxu0
        %v578 = vadd.f32 %v552, %v577
        %579 = vdwg.mxu0
        %580 = vmatpush.msra.mxu0 0.0
        %581 = vmatpush.msra.mxu0 0.0
        %582 = vmatpush.msra.mxu0 0.0
        %583 = vmatpush.msra.mxu0 0.0
        %584 = vmatpush.msra.mxu0 0.0
        %585 = vmatpush.msra.mxu0 0.0
        %586 = vmatpush.msra.mxu0 0.0
        %587 = vmatpush.msra.mxu0 0.0
        %588 = vmatpush.msra.mxu0 %v549
        %589 = vmatpush.msra.mxu0 %v547
        %590 = vmatpush.msra.mxu0 %v545
        %591 = vmatpush.msra.mxu0 %v543
        %592 = vmatpush.msra.mxu0 %v541
        %593 = vmatpush.msra.mxu0 %v539
        %594 = vmatpush.msra.mxu0 %v537
        %595 = vmatpush.msra.mxu0 %v535
        %596 = vmatmul.f32.gmra.mxu0 %v558
        %v597 = vpop.f32.mrf.mxu0
        %v598 = vadd.f32 %v553, %v597
        %599 = vdwg.mxu0
        %601 = vrot.lane.b32.xlu0 %v578, 32
        %v602 = vpop.permute.xlu0 %601
        %v604 = vadd.f32 %v578, %v602
        %v605 = vxor.u32 %v604, 2147483648
        %v606 = vmul.f32 %v605, 1.442695
        %v607 = vpow.pop %v606
        %v608 = vadd.f32 %v607, 1.0
        %v609 = vrcp.pop %v608
        %v610 = vmul.f32 %v608, %v609
        %v611 = vsub.f32 1.0, %v610
        %v612 = vmul.f32 %v609, %v611
        %v613 = vadd.f32 %v609, %v612
        %vm614 = vweird.f32 %v608
        %vm615 = vweird.f32 %v609
        %vm616 = vmor %vm614, %vm615
        %v617 = vsel %vm616, %v609, %v613
        %v618 = vand.u32 2147483647, %v608
        %vm619 = vcmp.eq.f32.partialorder %v618, 8.507059e+37
        %v620 = vand.u32 %v608, 2147483648
        %v621 = vor.u32 1.1754944e-38, %v620
        %v622 = vsel %vm619, %v621, %v617
        %v623 = vmul.f32 1.0, %v622
        %625 = vrot.lane.b32.xlu0 %v598, 32
        %v626 = vpop.permute.xlu0 %625
        %v628 = vadd.f32 %v578, %v626
        %v629 = vxor.u32 %v628, 2147483648
        %v630 = vmul.f32 %v629, 1.442695
        %v631 = vpow.pop %v630
        %v632 = vadd.f32 %v631, 1.0
        %v633 = vrcp.pop %v632
        %v634 = vmul.f32 %v632, %v633
        %v635 = vsub.f32 1.0, %v634
        %v636 = vmul.f32 %v633, %v635
        %v637 = vadd.f32 %v633, %v636
        %vm638 = vweird.f32 %v632
        %vm639 = vweird.f32 %v633
        %vm640 = vmor %vm638, %vm639
        %v641 = vsel %vm640, %v633, %v637
        %v642 = vand.u32 2147483647, %v632
        %vm643 = vcmp.eq.f32.partialorder %v642, 8.507059e+37
        %v644 = vand.u32 %v632, 2147483648
        %v645 = vor.u32 1.1754944e-38, %v644
        %v646 = vsel %vm643, %v645, %v641
        %v647 = vmul.f32 1.0, %v646
        %648 = vrot.lane.b32.xlu0 %v598, 96
        %v649 = vpop.permute.xlu0 %648
        %v651 = vmul.f32 %v623, %v649
        %653 = vrot.lane.b32.xlu0 %v651, 64
        %v654 = vpop.permute.xlu0 %653
        %v656 = vadd.f32 %v578, %v654
        %v657 = vtanh.pop %v656
        %v658 = vsub.f32 1.0, %v647
        %660 = vrot.lane.b32.xlu0 %v657, 96
        %v661 = vpop.permute.xlu0 %660
        %v663 = vmul.f32 %v658, %v661
        %v664 = vmul.f32 %v647, %v530
        %v665 = vadd.f32 %v663, %v664
        %v666 = vld [vmem:[%s7] sm:$0x1]
        %v668 = vperm.slane %v666, 0
        %669 = vrot.lane.b32.xlu0 %v668, 32
        %v670 = vpop.permute.xlu0 %669
        %v672 = vmul.f32 %v665, %v670
        %674 = vrot.lane.b32.xlu0 %v672, 96
        %v675 = vpop.permute.xlu0 %674
        %v676 = vsel %vm532, %v675, 0
        %v679 = vsel %vm532, %v525, 0
        %681 = vmatpush.xpose.msra.mxu0 0.0
        %682 = vmatpush.xpose.msra.mxu0 0.0
        %683 = vmatpush.xpose.msra.mxu0 0.0
        %684 = vmatpush.xpose.msra.mxu0 0.0
        %685 = vmatpush.xpose.msra.mxu0 0.0
        %686 = vmatpush.xpose.msra.mxu0 0.0
        %687 = vmatpush.xpose.msra.mxu0 0.0
        %688 = vmatpush.xpose.msra.mxu0 0.0
        %689 = vmatpush.xpose.msra.mxu0 0.0
        %690 = vmatpush.xpose.msra.mxu0 0.0
        %691 = vmatpush.xpose.msra.mxu0 0.0
        %692 = vmatpush.xpose.msra.mxu0 0.0
        %693 = vmatpush.xpose.msra.mxu0 0.0
        %694 = vmatpush.xpose.msra.mxu0 0.0
        %695 = vmatpush.xpose.msra.mxu0 0.0
        %696 = vmatpush.xpose.msra.mxu0 %v679
        %697 = vmatmul.f32.gmra.mxu0 %v676
        %v698 = vpop.f32.mrf.mxu0
        %v699 = vadd.f32 0.0, %v698
        %700 = vdwg.mxu0
        %v701 = vmul.f32 %v526, 1.442695
        %v702 = vpow.pop %v701
        %vm703 = vcmask 59392
        %v704 = vsel %vm703, %v702, 0.0
        %v705 = vrot.slane %v704, 4
        %v706 = vadd.f32 %v704, %v705
        %v707 = vrot.slane %v706, 2
        %v708 = vadd.f32 %v706, %v707
        %v709 = vrot.slane %v708, 1
        %v710 = vadd.f32 %v708, %v709
        %v711 = vmul.f32 %v699, 1.442695
        %v712 = vpow.pop %v711
        %v713 = vrcp.pop %v710
        %v714 = vmul.f32 %v712, %v713
        %vm715 = vcmask 57344
        %v716 = vsel %vm715, %v714, 0.0
        %717 = vadd.xlane.f32.xlu0 %v716
        %v718 = vpop.xlane.xlu0 %717
        %v719 = vrcp.pop %v718
        %v720 = vmul.f32 %v714, %v719
        %vm721 = vcmask 64512
        %v723 = vsel %vm721, %v720, 0
        %725 = vmatpush.msra.mxu0 0.0
        %726 = vmatpush.msra.mxu0 0.0
        %727 = vmatpush.msra.mxu0 0.0
        %728 = vmatpush.msra.mxu0 0.0
        %729 = vmatpush.msra.mxu0 0.0
        %730 = vmatpush.msra.mxu0 0.0
        %731 = vmatpush.msra.mxu0 0.0
        %732 = vmatpush.msra.mxu0 0.0
        %733 = vmatpush.msra.mxu0 0.0
        %734 = vmatpush.msra.mxu0 0.0
        %735 = vmatpush.msra.mxu0 0.0
        %736 = vmatpush.msra.mxu0 0.0
        %737 = vmatpush.msra.mxu0 0.0
        %738 = vmatpush.msra.mxu0 0.0
        %739 = vmatpush.msra.mxu0 0.0
        %740 = vmatpush.msra.mxu0 %v525
        %741 = vmatmul.f32.gmra.mxu0 %v723
        %v742 = vpop.f32.mrf.mxu0
        %v743 = vadd.f32 0.0, %v742
        %744 = vdwg.mxu0
        %v745 = vld [vmem:[%s8] sm:$0x1]
        %v747 = vperm.slane %v745, 0
        %748 = vrot.lane.b32.xlu0 %v747, 32
        %v749 = vpop.permute.xlu0 %748
        %v751 = vmul.f32 %v665, %v749
        %753 = vrot.lane.b32.xlu0 %v751, 96
        %v754 = vpop.permute.xlu0 %753
        %v755 = vsel %vm532, %v754, 0
        %v757 = vsel %vm532, %v524, 0
        %759 = vmatpush.xpose.msra.mxu0 0.0
        %760 = vmatpush.xpose.msra.mxu0 0.0
        %761 = vmatpush.xpose.msra.mxu0 0.0
        %762 = vmatpush.xpose.msra.mxu0 0.0
        %763 = vmatpush.xpose.msra.mxu0 0.0
        %764 = vmatpush.xpose.msra.mxu0 0.0
        %765 = vmatpush.xpose.msra.mxu0 0.0
        %766 = vmatpush.xpose.msra.mxu0 0.0
        %767 = vmatpush.xpose.msra.mxu0 0.0
        %768 = vmatpush.xpose.msra.mxu0 0.0
        %769 = vmatpush.xpose.msra.mxu0 0.0
        %770 = vmatpush.xpose.msra.mxu0 0.0
        %771 = vmatpush.xpose.msra.mxu0 0.0
        %772 = vmatpush.xpose.msra.mxu0 0.0
        %773 = vmatpush.xpose.msra.mxu0 0.0
        %774 = vmatpush.xpose.msra.mxu0 %v757
        %775 = vmatmul.f32.gmra.mxu0 %v755
        %v776 = vpop.f32.mrf.mxu0
        %v777 = vadd.f32 0.0, %v776
        %778 = vdwg.mxu0
        %vm779 = vcmask 24576
        %v780 = vsel %vm779, %v777, -inf
        %781 = vmax.xlane.f32.xlu0 %v780
        %v782 = vpop.xlane.xlu0 %781
        %v783 = vsub.f32 %v777, %v782
        %v784 = vmul.f32 %v783, 1.442695
        %v785 = vpow.pop %v784
        %v786 = vsel %vm779, %v785, 0.0
        %787 = vadd.xlane.f32.xlu0 %v786
        %v788 = vpop.xlane.xlu0 %787
        %v789 = vrcp.pop %v788
        %v790 = vmul.f32 %v785, %v789
        %vm791 = vcmask 31744
        %v793 = vsel %vm791, %v790, 0
        %vm795 = vcmask 1043456
        %v796 = vsel %vm795, %v524, 0
        %798 = vmatpush.msra.mxu0 0.0
        %799 = vmatpush.msra.mxu0 0.0
        %800 = vmatpush.msra.mxu0 0.0
        %801 = vmatpush.msra.mxu0 0.0
        %802 = vmatpush.msra.mxu0 0.0
        %803 = vmatpush.msra.mxu0 0.0
        %804 = vmatpush.msra.mxu0 0.0
        %805 = vmatpush.msra.mxu0 0.0
        %806 = vmatpush.msra.mxu0 0.0
        %807 = vmatpush.msra.mxu0 0.0
        %808 = vmatpush.msra.mxu0 0.0
        %809 = vmatpush.msra.mxu0 0.0
        %810 = vmatpush.msra.mxu0 0.0
        %811 = vmatpush.msra.mxu0 0.0
        %812 = vmatpush.msra.mxu0 0.0
        %813 = vmatpush.msra.mxu0 %v796
        %814 = vmatmul.f32.gmra.mxu0 %v793
        %v815 = vpop.f32.mrf.mxu0
        %v816 = vadd.f32 0.0, %v815
        %817 = vdwg.mxu0
        %819 = vrot.lane.b32.xlu0 %v665, 96
        %v820 = vpop.permute.xlu0 %819
        %823 = vrot.lane.b32.xlu0 %v743, 32
        %v824 = vpop.permute.xlu0 %823
        %827 = vrot.lane.b32.xlu0 %v816, 64
        %v828 = vpop.permute.xlu0 %827
        %v830 = vsel %vm532, %v820, %v824
        %v831 = vsel %vm556, %v830, %v828
        %v832 = vld [vmem:[%s9] sm:$0xff]
        %v833 = vld [vmem:[%s9 + $0x8] sm:$0xff]
        %v834 = vld [vmem:[%s9 + $0x10] sm:$0xff]
        %v835 = vld [vmem:[%s9 + $0x18] sm:$0xff]
        %v836 = vld [vmem:[%s9 + $0x20] sm:$0xff]
        %v837 = vld [vmem:[%s9 + $0x28] sm:$0xff]
        %v838 = vld [vmem:[%s9 + $0x30] sm:$0xff]
        %v839 = vld [vmem:[%s9 + $0x38] sm:$0xff]
        %v840 = vld [vmem:[%s9 + $0x40] sm:$0xff]
        %v841 = vld [vmem:[%s9 + $0x48] sm:$0xff]
        %v842 = vld [vmem:[%s9 + $0x50] sm:$0xff]
        %v843 = vld [vmem:[%s9 + $0x58] sm:$0xff]
        %v844 = vld [vmem:[%s10] sm:$0x1]
        %vm845 = vcmask 785408
        %v847 = vsel %vm845, %v831, 0
        %849 = vmatpush.msra.mxu0 0.0
        %850 = vmatpush.msra.mxu0 0.0
        %851 = vmatpush.msra.mxu0 0.0
        %852 = vmatpush.msra.mxu0 0.0
        %853 = vmatpush.msra.mxu0 %v843
        %854 = vmatpush.msra.mxu0 %v842
        %855 = vmatpush.msra.mxu0 %v841
        %856 = vmatpush.msra.mxu0 %v840
        %857 = vmatpush.msra.mxu0 %v839
        %858 = vmatpush.msra.mxu0 %v838
        %859 = vmatpush.msra.mxu0 %v837
        %860 = vmatpush.msra.mxu0 %v836
        %861 = vmatpush.msra.mxu0 %v835
        %862 = vmatpush.msra.mxu0 %v834
        %863 = vmatpush.msra.mxu0 %v833
        %864 = vmatpush.msra.mxu0 %v832
        %865 = vmatmul.f32.gmra.mxu0 %v847
        %v866 = vpop.f32.mrf.mxu0
        %v867 = vadd.f32 %v844, %v866
        %868 = vdwg.mxu0
        %v869 = vxor.u32 %v867, 2147483648
        %v870 = vmul.f32 %v869, 1.442695
        %v871 = vpow.pop %v870
        %v872 = vadd.f32 %v871, 1.0
        %v873 = vrcp.pop %v872
        %v874 = vmul.f32 %v872, %v873
        %v875 = vsub.f32 1.0, %v874
        %v876 = vmul.f32 %v873, %v875
        %v877 = vadd.f32 %v873, %v876
        %vm878 = vweird.f32 %v872
        %vm879 = vweird.f32 %v873
        %vm880 = vmor %vm878, %vm879
        %v881 = vsel %vm880, %v873, %v877
        %v882 = vand.u32 2147483647, %v872
        %vm883 = vcmp.eq.f32.partialorder %v882, 8.507059e+37
        %v884 = vand.u32 %v872, 2147483648
        %v885 = vor.u32 1.1754944e-38, %v884
        %v886 = vsel %vm883, %v885, %v881
        %v887 = vmul.f32 1.0, %v886
        %vm888 = vcmask 253952
        %889 = vst.msk [vmem:[%s485] sm:$0x1] %vm888, %v820
        %890 = vst.msk [vmem:[%s491] sm:$0x1] %vm715, %v720
        %891 = vst.msk [vmem:[%s497] sm:$0x1] %vm888, %v867
        %893 = vrot.lane.b32.xlu0 %v887, 96
        %v894 = vpop.permute.xlu0 %893
        %vm896 = vcmask 0
        %897 = vst.msk [vmem:[%s522] sm:$0x1] %vm896, %v894
        %s898 = sand.u32 %s280, 1
        %s899 = scalar_lea.sflag [#allocation5], %s898
        %s900 = sand.u32 %s280, 1
        %s901 = scalar_lea.vmem [#allocation4], %s900
        %s902 = sand.u32 %s40, 1
        %s903 = scalar_lea.sflag [#allocation7], %s902
        %s904 = sand.u32 %s306, 1
        %s905 = scalar_lea.vmem [#allocation6], %s904
        %s906 = sand.u32 %s40, 1
        %s907 = scalar_lea.sflag [#allocation7], %s906
        %s908 = sand.u32 %s332, 1
        %s909 = scalar_lea.vmem [#allocation8], %s908
        %p910 = scmp.lt.s32.totalorder %s40, 1
        %s911 = scalar_select %p910, %s40, 1
        %s912 = scalar_lea.vmem %s14, %s911
        // Predicated region
        $region61: #{tpu_custom_call.1} parent=59 // pred_check
          %p913 = pneg %p290
        $region62: #{tpu_custom_call.1} parent=59 // pred_check_branch
          %915 = sbr.rel (%p913) target = $region64
        $region63: #{tpu_custom_call.1} parent=59 // pred_region
          %917 = vsyncadd %s899, 0
          %s918 = scalar_lea.hbm %s11, %s40
          %s920 = sshll.u32 %s901, 4
          %s921 = int_to_ptr.vmem [resolvable:$true] %s920
          %s922 = sshll.u32 %s918, 4
          %s923 = int_to_ptr.hbm [resolvable:$true] %s922
          %925 = dma.vmem_to_hbm [thread:$0]  %s921, 16, %s923, %s899
        $region64: #{tpu_custom_call.1} parent=59 // pred_fallthru
          _
        // Predicated region
        $region65: #{tpu_custom_call.1} parent=59 // pred_check
          %p926 = pneg %p316
        $region66: #{tpu_custom_call.1} parent=59 // pred_check_branch
          %928 = sbr.rel (%p926) target = $region68
        $region67: #{tpu_custom_call.1} parent=59 // pred_region
          %930 = vsyncadd %s903, 0
          %s931 = scalar_lea.hbm %s12, %s40
          %s933 = sshll.u32 %s905, 4
          %s934 = int_to_ptr.vmem [resolvable:$true] %s933
          %s935 = sshll.u32 %s931, 4
          %s936 = int_to_ptr.hbm [resolvable:$true] %s935
          %938 = dma.vmem_to_hbm [thread:$0]  %s934, 16, %s936, %s903
        $region68: #{tpu_custom_call.1} parent=59 // pred_fallthru
          _
        // Predicated region
        $region69: #{tpu_custom_call.1} parent=59 // pred_check
          %p939 = pneg %p342
        $region70: #{tpu_custom_call.1} parent=59 // pred_check_branch
          %941 = sbr.rel (%p939) target = $region72
        $region71: #{tpu_custom_call.1} parent=59 // pred_region
          %943 = vsyncadd %s907, 0
          %s944 = scalar_lea.hbm %s13, %s40
          %s946 = sshll.u32 %s909, 4
          %s947 = int_to_ptr.vmem [resolvable:$true] %s946
          %s948 = sshll.u32 %s944, 4
          %s949 = int_to_ptr.hbm [resolvable:$true] %s948
          %951 = dma.vmem_to_hbm [thread:$0]  %s947, 16, %s949, %s907
        $region72: #{tpu_custom_call.1} parent=59 // pred_fallthru
          _
        // Predicated region
        $region73: #{tpu_custom_call.1} parent=59 // pred_check
          %p952 = pneg %p368
        $region74: #{tpu_custom_call.1} parent=59 // pred_check_branch
          %954 = sbr.rel (%p952) target = $region76
        $region75: #{tpu_custom_call.1} parent=59 // pred_region
          _
        $region76: #{tpu_custom_call.1} parent=59 // pred_fallthru
          _
      $region60: #{tpu_custom_call.1} parent=5 // pred_fallthru
        _
      %p955 = scmp.le.s32.totalorder 2, %s35
      // Predicated region
      $region77: #{tpu_custom_call.1} parent=5 // pred_check
        %p956 = pneg %p955
      $region78: #{tpu_custom_call.1} parent=5 // pred_check_branch
        %958 = sbr.rel (%p956) target = $region80
      $region79: #{tpu_custom_call.1} parent=5 // pred_region
        %s959 = ssub.s32 %s35, 2
        // Predicated region
        $region81: #{tpu_custom_call.1} parent=79 // pred_check
          %p960 = pneg %p296
        $region82: #{tpu_custom_call.1} parent=79 // pred_check_branch
          %962 = sbr.rel (%p960) target = $region84
        $region83: #{tpu_custom_call.1} parent=79 // pred_region
          %s963 = sand.u32 %s281, 1
          %s964 = scalar_lea.sflag [#allocation5], %s963
          %s965 = sand.u32 %s281, 1
          %s966 = scalar_lea.vmem [#allocation4], %s965
          %968 = dma.done %s964, 16
        $region84: #{tpu_custom_call.1} parent=79 // pred_fallthru
          _
        // Predicated region
        $region85: #{tpu_custom_call.1} parent=79 // pred_check
          %p969 = pneg %p322
        $region86: #{tpu_custom_call.1} parent=79 // pred_check_branch
          %971 = sbr.rel (%p969) target = $region88
        $region87: #{tpu_custom_call.1} parent=79 // pred_region
          %s972 = sand.u32 %s41, 1
          %s973 = scalar_lea.sflag [#allocation7], %s972
          %s974 = sand.u32 %s307, 1
          %s975 = scalar_lea.vmem [#allocation6], %s974
          %977 = dma.done %s973, 16
        $region88: #{tpu_custom_call.1} parent=79 // pred_fallthru
          _
        // Predicated region
        $region89: #{tpu_custom_call.1} parent=79 // pred_check
          %p978 = pneg %p348
        $region90: #{tpu_custom_call.1} parent=79 // pred_check_branch
          %980 = sbr.rel (%p978) target = $region92
        $region91: #{tpu_custom_call.1} parent=79 // pred_region
          %s981 = sand.u32 %s41, 1
          %s982 = scalar_lea.sflag [#allocation7], %s981
          %s983 = sand.u32 %s333, 1
          %s984 = scalar_lea.vmem [#allocation8], %s983
          %986 = dma.done %s982, 16
        $region92: #{tpu_custom_call.1} parent=79 // pred_fallthru
          _
        // Predicated region
        $region93: #{tpu_custom_call.1} parent=79 // pred_check
          %p987 = pneg %p374
        $region94: #{tpu_custom_call.1} parent=79 // pred_check_branch
          %989 = sbr.rel (%p987) target = $region96
        $region95: #{tpu_custom_call.1} parent=79 // pred_region
          %p990 = scmp.lt.s32.totalorder %s41, 1
          %s991 = scalar_select %p990, %s41, 1
          %s992 = scalar_lea.vmem %s14, %s991
        $region96: #{tpu_custom_call.1} parent=79 // pred_fallthru
          _
      $region80: #{tpu_custom_call.1} parent=5 // pred_fallthru
        _
    $region6: #{tpu_custom_call.1} parent=1 // loop_footer
      %s39 = sadd.s32 1, %s35
    $region7: #{tpu_custom_call.1} parent=1 // loop_footer_branch
      %34 = sbr.rel target = $region3
    $region8: #{tpu_custom_call.1} parent=1 // loop_exit
      _
    %993 = vsyncpa [#allocation5], 1
    %s994 = scalar_lea.sflag [#allocation5], 1
    %995 = vsyncpa %s994, 1
    %996 = vsyncpa [#allocation7], 1
    %s997 = scalar_lea.sflag [#allocation7], 1
    %998 = vsyncpa %s997, 1

</llo_original>
